<compile_context>
chip_gen: v7x
topology: tpu7x:2x2x1
jax: 0.10.0
libtpu: 0.0.40
codegen_flags: <defaults>
</compile_context>

<pallas_src>
import functools
import math

import jax
import jax.numpy as jnp
from jax.experimental import pallas as pl
from jax.experimental.pallas import tpu as pltpu


# ---------------------------------------------------------------------------
# Kernel bodies
# ---------------------------------------------------------------------------
def _softmax_qkT(q, k, scale, masked=None):
    """q: (G, TQ, d), k: (G, S, d)  ->  softmax(q k^T * scale): (G, TQ, S) in f32."""
    s = jax.lax.dot_general(
        q, k,
        dimension_numbers=(((2,), (2,)), ((0,), (0,))),   # contract last dims, batch G
        preferred_element_type=jnp.float32) * scale
    if masked is not None:
        # `masked` is int8: 1 where the original mask == 0  ->  fill with -1e6.
        s = jnp.where(masked != 0, jnp.float32(-1e6), s)
    s = s - jnp.max(s, axis=-1, keepdims=True)            # numerically-stable softmax
    e = jnp.exp(s)
    inv = pl.reciprocal(jnp.sum(e, axis=-1, keepdims=True), approx=False)
    return e * inv


def _sdpa_kernel(q_ref, k_ref, score_ref, *, scale):
    score_ref[...] = _softmax_qkT(q_ref[...], k_ref[...], scale).astype(score_ref.dtype)


def _sdpa_kernel_masked(q_ref, k_ref, m_ref, score_ref, *, scale):
    score_ref[...] = _softmax_qkT(
        q_ref[...], k_ref[...], scale, m_ref[...]).astype(score_ref.dtype)


# ---------------------------------------------------------------------------
# Tiling / VMEM sizing helpers
# ---------------------------------------------------------------------------
def _vmem_budget_bytes():
    """Usable scoped-VMEM budget for this generation (leaves compiler headroom)."""
    try:
        info = pltpu.get_tpu_info()
        cap = int(getattr(info, "vmem_capacity_bytes", 64 << 20))
    except Exception:
        cap = 64 << 20                      # conservative (v7x-sized) default
    return int(cap * 0.75)                  # ~96 MiB on v5e/v6e, ~48 MiB on v7x


def _block_bytes(group, q_tile, S, d_k, has_mask, score_itemsize):
    q_b = group * q_tile * d_k * 4                       # f32 Q block
    k_b = group * S * d_k * 4                            # f32 K block (reused over q tiles)
    m_b = group * q_tile * S * 1 if has_mask else 0      # int8 mask block
    s_b = group * q_tile * S * score_itemsize            # score block
    return q_b + k_b + m_b + s_b


def _pick_tiling(bh, S, d_k, has_mask, score_itemsize, budget):
    """Pick (group, q_tile): largest blocks whose double-buffered footprint fits VMEM."""
    big_vmem = budget >= (72 << 20)          # v5e/v6e-class (128 MiB physical)
    group_target = 16 if big_vmem else 8

    def fits(g, qt):
        # 2x for double-buffering + 10% headroom.
        return 2.2 * _block_bytes(g, qt, S, d_k, has_mask, score_itemsize) <= budget

    qt_opts = [qt for qt in ((256, 128) if big_vmem else (128,)) if S % qt == 0]
    if not qt_opts:
        qt_opts = [128]                      # caller guarantees S % 128 == 0
    group_opts = [g for g in range(min(bh, group_target), 0, -1) if bh % g == 0]

    combos = [(g, qt) for qt in qt_opts for g in group_opts]
    combos.sort(key=lambda gq: _block_bytes(gq[0], gq[1], S, d_k, has_mask,
                                            score_itemsize), reverse=True)
    choice = next(((g, qt) for g, qt in combos if fits(g, qt)), None)
    if choice is None:
        # Last resort (huge S on small-VMEM parts): shrink q_tile below 128.
        g, qt = 1, 128
        while qt > 32 and not fits(g, qt):
            qt //= 2
        choice = (g, qt)
    g, qt = choice

    # Megacore (v7x): expose >= 2 grid steps on a parallel axis when the shape allows.
    if (bh // g) * (S // qt) < 2:
        if qt > 128 and S // (qt // 2) >= 2:
            qt //= 2
        elif bh > 1:
            g = max(c for c in range(1, bh // 2 + 1) if bh % c == 0)
        elif S >= 256:
            qt = max(128, qt // 2)
    return g, qt


# ---------------------------------------------------------------------------
# Wrapper
# ---------------------------------------------------------------------------
def _xla_sdpa(q, k, v, mask, scale, score_dtype):
    """Plain-XLA path for small / non-128-divisible S (step overhead dominated)."""
    s = jnp.einsum("bhqd,bhkd->bhqk", q.astype(jnp.float32), k.astype(jnp.float32),
                   precision=jax.lax.Precision.HIGHEST) * scale
    if mask is not None:
        s = jnp.where(mask == 0, jnp.float32(-1e6), s)
    score = jax.nn.softmax(s, axis=-1).astype(score_dtype)
    return score, v


def scaled_dot_product_attention(q, k, v, mask=None, *, score_dtype=jnp.float32,
                                 force_pallas=False):
    """q, k: [B, H, S, d_k]; v: [B, H, S, d_v].  Returns (score, v) like the module."""
    B, H, S, d_k = q.shape
    assert k.shape == (B, H, S, d_k)
    d_v = v.shape[-1]
    # NOTE: the reference module scales by 1/sqrt(d of V), not 1/sqrt(d_k) — keep it.
    scale = 1.0 / math.sqrt(float(d_v))

    if mask is not None:
        assert mask.shape == (B, H, S, S), (
            "mask shape {} is not equal to attention score shape {}.".format(
                mask.shape, (B, H, S, S)))

    bh = B * H
    # Small-S / awkward-shape fallback: sub-128 lane dims force masked vst.msk stores
    # and the 0.35us/step + call overhead swamps any kernel win at demo scale.
    if S % 128 != 0 or (not force_pallas and bh * S * S < (1 << 20)):
        return _xla_sdpa(q, k, v, mask, scale, score_dtype)

    score_itemsize = jnp.dtype(score_dtype).itemsize
    budget = _vmem_budget_bytes()
    group, q_tile = _pick_tiling(bh, S, d_k, mask is not None, score_itemsize, budget)

    q2 = q.reshape(bh, S, d_k).astype(jnp.float32)
    k2 = k.reshape(bh, S, d_k).astype(jnp.float32)

    q_spec = pl.BlockSpec((group, q_tile, d_k), lambda i, j: (i, j, 0))
    # IMPORTANT: K's index_map must stay independent of j (the q-tile axis) and the
    # q-tile axis must stay the innermost grid dim, so the (group, S, d_k) K block is
    # DMA'd once per head group and reused across all q tiles.  Do not reorder.
    k_spec = pl.BlockSpec((group, S, d_k), lambda i, j: (i, 0, 0))
    s_spec = pl.BlockSpec((group, q_tile, S), lambda i, j: (i, j, 0))

    in_specs = [q_spec, k_spec]
    args = [q2, k2]
    if mask is not None:
        # int8 "is-masked" flag (1 where mask == 0): 4x fewer HBM bytes than the f32
        # mask, identical semantics to masked_fill(mask == 0, -1e6).
        masked_i8 = (mask == 0).astype(jnp.int8).reshape(bh, S, S)
        in_specs.append(pl.BlockSpec((group, q_tile, S), lambda i, j: (i, j, 0)))
        args.append(masked_i8)
        kernel = functools.partial(_sdpa_kernel_masked, scale=scale)
    else:
        kernel = functools.partial(_sdpa_kernel, scale=scale)

    # Scoped-VMEM limit sized from the real double-buffered block footprint, clamped
    # to this generation's usable VMEM (no arbitrary 32 MiB cap).
    blk = _block_bytes(group, q_tile, S, d_k, mask is not None, score_itemsize)
    vmem_limit = int(min(budget, max(4 << 20, int(2.2 * blk) + (2 << 20))))

    score2 = pl.pallas_call(
        kernel,
        out_shape=jax.ShapeDtypeStruct((bh, S, S), score_dtype),
        grid_spec=pltpu.PrefetchScalarGridSpec(
            num_scalar_prefetch=0,
            grid=(bh // group, S // q_tile),   # (head groups, q tiles): q tiles innermost
            in_specs=in_specs,
            out_specs=s_spec),
        compiler_params=pltpu.CompilerParams(
            dimension_semantics=("parallel", "parallel"),
            vmem_limit_bytes=vmem_limit),
    )(*args)

    score = score2.reshape(B, H, S, S)
    # The module returns (score, v): v untouched; score @ v is dead code -> not computed.
    return score, v


# ---------------------------------------------------------------------------
# Pure-JAX reference (mirrors the PyTorch forward, including the return-v quirk)
# ---------------------------------------------------------------------------
def _reference(q, k, v, mask=None):
    d_v = v.shape[-1]
    s = jnp.einsum("bhqd,bhkd->bhqk", q, k,
                   precision=jax.lax.Precision.HIGHEST) / jnp.sqrt(jnp.float32(d_v))
    if mask is not None:
        s = jnp.where(mask == 0, -1e6, s)
    return jax.nn.softmax(s, axis=-1), v


if __name__ == "__main__":
    key = jax.random.PRNGKey(0)

    # --- Module-scale demo (d_model=32 over 4 heads -> d=8, seq=8).
    # S < 128, so this routes through the small-shape XLA fallback by design.
    batch, heads, seq, d = 2, 4, 8, 8
    kq, kk, kv, km = jax.random.split(key, 4)
    q = jax.random.normal(kq, (batch, heads, seq, d), jnp.float32)
    k = jax.random.normal(kk, (batch, heads, seq, d), jnp.float32)
    v = jax.random.normal(kv, (batch, heads, seq, d), jnp.float32)
    mask = (jax.random.uniform(km, (batch, heads, seq, seq)) > 0.3).astype(jnp.float32)

    score, v_out = scaled_dot_product_attention(q, k, v)
    jax.block_until_ready((score, v_out))
    s_ref, v_ref = _reference(q, k, v)
    assert jnp.allclose(score, s_ref, rtol=1e-5, atol=1e-5)
    assert jnp.allclose(v_out, v_ref)

    score_m, _ = scaled_dot_product_attention(q, k, v, mask=mask)
    jax.block_until_ready(score_m)
    s_mref, _ = _reference(q, k, v, mask=mask)
    assert jnp.allclose(score_m, s_mref, rtol=1e-5, atol=1e-5)

    # --- Pallas-path exercise at the smallest lane-dense shape (S = 128).
    B2, H2, S2, D2 = 1, 2, 128, 16
    kq2, kk2, kv2, km2 = jax.random.split(jax.random.PRNGKey(0), 4)
    q2 = jax.random.normal(kq2, (B2, H2, S2, D2), jnp.float32)
    k2 = jax.random.normal(kk2, (B2, H2, S2, D2), jnp.float32)
    v2 = jax.random.normal(kv2, (B2, H2, S2, D2), jnp.float32)
    mask2 = (jax.random.uniform(km2, (B2, H2, S2, S2)) > 0.3).astype(jnp.float32)

    p_score, p_v = scaled_dot_product_attention(q2, k2, v2, force_pallas=True)
    jax.block_until_ready((p_score, p_v))
    r_score, r_v = _reference(q2, k2, v2)
    assert jnp.allclose(p_score, r_score, rtol=1e-5, atol=1e-5)
    assert jnp.allclose(p_v, r_v)

    p_score_m, _ = scaled_dot_product_attention(q2, k2, v2, mask=mask2, force_pallas=True)
    jax.block_until_ready(p_score_m)
    r_score_m, _ = _reference(q2, k2, v2, mask=mask2)
    assert jnp.allclose(p_score_m, r_score_m, rtol=1e-5, atol=1e-5)

    # Opt-in bf16 score output (halves score writeback bytes); looser parity by design.
    p_score_bf16, _ = scaled_dot_product_attention(q2, k2, v2, score_dtype=jnp.bfloat16,
                                                   force_pallas=True)
    jax.block_until_ready(p_score_bf16)
    assert p_score_bf16.dtype == jnp.bfloat16
    assert jnp.allclose(p_score_bf16.astype(jnp.float32), r_score, rtol=1e-2, atol=1e-2)

    print("KERNEL_OK")
</pallas_src>

<mosaic_0001>
module attributes {stable_mosaic.version = 11 : i64} {
  func.func @_sdpa_kernel(%arg0: i32, %arg1: i32, %arg2: memref<1x128x16xf32, #tpu.memory_space<vmem>>, %arg3: memref<1x128x16xf32, #tpu.memory_space<vmem>>, %arg4: memref<1x128x128xf32, #tpu.memory_space<vmem>>) attributes {dimension_semantics = [#tpu.dimension_semantics<parallel>, #tpu.dimension_semantics<parallel>], iteration_bounds = array<i64: 2, 1>, scalar_prefetch = 0 : i64, scratch_operands = 0 : i64, tpu.core_type = #tpu.core_type<tc>, window_params = [{transform_indices = @transform_0, window_bounds = array<i64: 1, 128, 16>}, {transform_indices = @transform_1, window_bounds = array<i64: 1, 128, 16>}, {transform_indices = @transform_2, window_bounds = array<i64: 1, 128, 128>}]} {
    %c0 = arith.constant 0 : index
    %c0_0 = arith.constant 0 : index
    %c0_1 = arith.constant 0 : index
    %0 = vector.load %arg2[%c0, %c0_0, %c0_1] : memref<1x128x16xf32, #tpu.memory_space<vmem>>, vector<1x128x16xf32>
    %c0_2 = arith.constant 0 : index
    %c0_3 = arith.constant 0 : index
    %c0_4 = arith.constant 0 : index
    %1 = vector.load %arg3[%c0_2, %c0_3, %c0_4] : memref<1x128x16xf32, #tpu.memory_space<vmem>>, vector<1x128x16xf32>
    %cst = arith.constant dense<0.000000e+00> : vector<1x128x128xf32>
    %2 = tpu.matmul %0, %1, %cst {dimension_numbers = #tpu.dot_dimension_numbers<[2], [2], [1], [1], [0, 0, 0, 1, 1, 1], [0], [0]>} : vector<1x128x16xf32>, vector<1x128x16xf32>, vector<1x128x128xf32> -> vector<1x128x128xf32>
    %cst_5 = arith.constant 2.500000e-01 : f32
    %3 = vector.broadcast %cst_5 : f32 to vector<1x128x128xf32>
    %4 = arith.mulf %2, %3 : vector<1x128x128xf32>
    %cst_6 = arith.constant dense<0xFF800000> : vector<1x128xf32>
    %5 = vector.multi_reduction <maximumf>, %4, %cst_6 [2] : vector<1x128x128xf32> to vector<1x128xf32>
    %6 = vector.shape_cast %5 : vector<1x128xf32> to vector<1x128x1xf32>
    %7 = vector.broadcast %6 : vector<1x128x1xf32> to vector<1x128x128xf32>
    %8 = arith.subf %4, %7 : vector<1x128x128xf32>
    %9 = math.exp %8 : vector<1x128x128xf32>
    %cst_7 = arith.constant dense<0.000000e+00> : vector<1x128xf32>
    %10 = vector.multi_reduction <add>, %9, %cst_7 [2] : vector<1x128x128xf32> to vector<1x128xf32>
    %11 = vector.shape_cast %10 : vector<1x128xf32> to vector<1x128x1xf32>
    %12 = tpu.reciprocal %11 : vector<1x128x1xf32> -> vector<1x128x1xf32>
    %13 = vector.broadcast %12 : vector<1x128x1xf32> to vector<1x128x128xf32>
    %14 = arith.mulf %9, %13 : vector<1x128x128xf32>
    %c0_8 = arith.constant 0 : index
    %c0_9 = arith.constant 0 : index
    %c0_10 = arith.constant 0 : index
    %15 = vector.load %arg4[%c0_8, %c0_9, %c0_10] : memref<1x128x128xf32, #tpu.memory_space<vmem>>, vector<1x128x128xf32>
    tpu.vector_store %arg4[%c0_8, %c0_9, %c0_10], %14 {strides = array<i32>} : memref<1x128x128xf32, #tpu.memory_space<vmem>>, vector<1x128x128xf32>,
    return
  }
  func.func @transform_0(%arg0: i32, %arg1: i32) -> (i32, i32, i32) {
    %c0_i32 = arith.constant 0 : i32
    %c0_i32_0 = arith.constant 0 : i32
    return %arg0, %arg1, %c0_i32 : i32, i32, i32
  }
  func.func @transform_1(%arg0: i32, %arg1: i32) -> (i32, i32, i32) {
    %c0_i32 = arith.constant 0 : i32
    %c0_i32_0 = arith.constant 0 : i32
    %c0_i32_1 = arith.constant 0 : i32
    return %arg0, %c0_i32, %c0_i32_0 : i32, i32, i32
  }
  func.func @transform_2(%arg0: i32, %arg1: i32) -> (i32, i32, i32) {
    %c0_i32 = arith.constant 0 : i32
    %c0_i32_0 = arith.constant 0 : i32
    return %arg0, %arg1, %c0_i32 : i32, i32, i32
  }
}

</mosaic_0001>

<llo_original>
// kernel: tpu_custom_call.1
$region0: #{tpu_custom_call.1}
  #allocation0 [shape = 'u32[]', space=smem, size = 0x4, offset = 0x4, fixed_abs, tag = 'smem constant byte address 0x4 - core index']
  #allocation1 [shape = 'u32[144,128]{1,0:T(1,128)}', space=vmem, size = 0x12000, scoped, tag = 'internal scratch']
  %s0 = inlined_call_operand.vmem [shape: f32[2,128,16], index: 0, kind: input, shape index: {}]
  %s1 = inlined_call_operand.vmem [shape: f32[2,128,16], index: 1, kind: input, shape index: {}]
  %s2 = inlined_call_operand.hbm [shape: f32[2,128,128], index: 2, kind: output, shape index: {}]
  %s3 = sld [smem:[#allocation0]]
  $region41: #{tpu_custom_call.1} parent=0
    _
  %s5 = ssub.s32 1, %s3
  %s6 = scalar_select 0, %s5, %s3
  $region1: #{tpu_custom_call.1} parent=0
    #allocation2 [shape = 'u8[131072]{0}', space=vmem, size = 0x20000, scoped, tag = 'output window, operand 0']
    #allocation3 [shape = 's32[2]{0}', space=sflag, size = 0x8, scoped, tag = 'scoped memory for tpu_custom_call.1']
    %7 = vsyncpa [#allocation3], 0
    %s8 = scalar_lea.sflag [#allocation3], 1
    %9 = vsyncpa %s8, 0
    loop: start=0, step=1, limit=4
    $region2: #{tpu_custom_call.1} parent=1 // loop_pre_header
      _
    $region3: #{tpu_custom_call.1} parent=1 // loop_header
      %s11 = sphi 0, %s15
      %p12 = scmp.ge.s32.totalorder %s11, 4
      %s18 = sphi 0, %s30
      %s19 = sphi 0, %s26
      %s20 = sphi 0, %s18
      %s21 = sphi 0, %s19
      %s22 = sphi 0, %s20
      %s23 = sphi 0, %s21
      %s35 = sphi 0, %s37
      %s38 = sphi 0, %s35
      %s39 = sphi 0, %s38
      %s55 = sphi 0, %s39
      %s61 = sphi 0, %s63
      %s64 = sphi 0, %s61
      %s65 = sphi 0, %s64
      %s81 = sphi 0, %s65
      %s89 = sphi 0, %s91
      %s92 = sphi 0, %s89
      %s93 = sphi 0, %s92
      %s109 = sphi 0, %s93
    $region4: #{tpu_custom_call.1} parent=1 // loop_header_branch
      %14 = sbr.rel (%p12) target = $region8
    $region5: #{tpu_custom_call.1} parent=1 // loop_body
      %s16 = ssub.s32 %s11, 1
      %s17 = ssub.s32 %s11, 2
      %s24 = sadd.s32 1, %s19
      %p25 = scmp.ge.s32.totalorder %s24, 1
      %s26 = scalar_select %p25, 0, %s24
      %s27 = sadd.s32 1, %s18
      %s28 = scalar_select %p25, %s27, %s18
      %p29 = scmp.ge.s32.totalorder %s28, 2
      %s30 = scalar_select %p29, 0, %s28
      %s31 = ssub.s32 %s18, %s30
      %s32 = ssub.s32 %s19, %s26
      %s33 = sor.u32 %s31, %s32
      %p34 = scmp.eq.s32.totalorder %s33, 0
      %s36 = sadd.s32 %s35, 1
      %s37 = scalar_select %p34, %s35, %s36
      %p40 = pneg %p34
      %p41 = scmp.eq.s32.totalorder %s11, 1
      %p42 = por %p40, %p41
      %p43 = scmp.ne.s32.totalorder %s35, %s38
      %p44 = scmp.eq.s32.totalorder %s11, 0
      %p45 = por %p43, %p44
      %p46 = scmp.ne.s32.totalorder %s35, %s38
      %p47 = scmp.eq.s32.totalorder %s16, 1
      %p48 = por %p46, %p47
      %p49 = scmp.ne.s32.totalorder %s38, %s39
      %p50 = scmp.eq.s32.totalorder %s16, 0
      %p51 = por %p49, %p50
      %p52 = scmp.ne.s32.totalorder %s38, %s39
      %p53 = scmp.eq.s32.totalorder %s17, 1
      %p54 = por %p52, %p53
      %p56 = scmp.ne.s32.totalorder %s39, %s55
      %p57 = scmp.eq.s32.totalorder %s17, 0
      %p58 = por %p56, %p57
      %s59 = ssub.s32 %s18, %s30
      %p60 = scmp.eq.s32.totalorder %s59, 0
      %s62 = sadd.s32 %s61, 1
      %s63 = scalar_select %p60, %s61, %s62
      %p66 = pneg %p60
      %p67 = scmp.eq.s32.totalorder %s11, 1
      %p68 = por %p66, %p67
      %p69 = scmp.ne.s32.totalorder %s61, %s64
      %p70 = scmp.eq.s32.totalorder %s11, 0
      %p71 = por %p69, %p70
      %p72 = scmp.ne.s32.totalorder %s61, %s64
      %p73 = scmp.eq.s32.totalorder %s16, 1
      %p74 = por %p72, %p73
      %p75 = scmp.ne.s32.totalorder %s64, %s65
      %p76 = scmp.eq.s32.totalorder %s16, 0
      %p77 = por %p75, %p76
      %p78 = scmp.ne.s32.totalorder %s64, %s65
      %p79 = scmp.eq.s32.totalorder %s17, 1
      %p80 = por %p78, %p79
      %p82 = scmp.ne.s32.totalorder %s65, %s81
      %p83 = scmp.eq.s32.totalorder %s17, 0
      %p84 = por %p82, %p83
      %s85 = ssub.s32 %s18, %s30
      %s86 = ssub.s32 %s19, %s26
      %s87 = sor.u32 %s85, %s86
      %p88 = scmp.eq.s32.totalorder %s87, 0
      %s90 = sadd.s32 %s89, 1
      %s91 = scalar_select %p88, %s89, %s90
      %p94 = pneg %p88
      %p95 = scmp.eq.s32.totalorder %s11, 1
      %p96 = por %p94, %p95
      %p97 = scmp.ne.s32.totalorder %s89, %s92
      %p98 = scmp.eq.s32.totalorder %s11, 0
      %p99 = por %p97, %p98
      %p100 = scmp.ne.s32.totalorder %s89, %s92
      %p101 = scmp.eq.s32.totalorder %s16, 1
      %p102 = por %p100, %p101
      %p103 = scmp.ne.s32.totalorder %s92, %s93
      %p104 = scmp.eq.s32.totalorder %s16, 0
      %p105 = por %p103, %p104
      %p106 = scmp.ne.s32.totalorder %s92, %s93
      %p107 = scmp.eq.s32.totalorder %s17, 1
      %p108 = por %p106, %p107
      %p110 = scmp.ne.s32.totalorder %s93, %s109
      %p111 = scmp.eq.s32.totalorder %s17, 0
      %p112 = por %p110, %p111
      %p113 = scmp.le.s32.totalorder 1, %s11
      %p114 = scmp.lt.s32.totalorder %s11, 3
      %p115 = pnand %p113, %p114
      %p116 = pneg %p115
      // Predicated region
      $region9: #{tpu_custom_call.1} parent=5 // pred_check
        _
      $region10: #{tpu_custom_call.1} parent=5 // pred_check_branch
        %118 = sbr.rel (%p115) target = $region12
      $region11: #{tpu_custom_call.1} parent=5 // pred_region
        %s119 = ssub.s32 %s11, 1
      $region12: #{tpu_custom_call.1} parent=5 // pred_fallthru
        _
      %p120 = scmp.lt.s32.totalorder %s11, 2
      // Predicated region
      $region13: #{tpu_custom_call.1} parent=5 // pred_check
        %p121 = pneg %p120
      $region14: #{tpu_custom_call.1} parent=5 // pred_check_branch
        %123 = sbr.rel (%p121) target = $region16
      $region15: #{tpu_custom_call.1} parent=5 // pred_region
        // Predicated region
        $region17: #{tpu_custom_call.1} parent=15 // pred_check
          %p124 = pneg %p45
        $region18: #{tpu_custom_call.1} parent=15 // pred_check_branch
          %126 = sbr.rel (%p124) target = $region20
        $region19: #{tpu_custom_call.1} parent=15 // pred_region
          %s127 = smul.u32 16, %s19
          %p128 = scmp.lt.s32.totalorder %s18, 1
          %s129 = scalar_select %p128, %s18, 1
          %p130 = scmp.lt.s32.totalorder %s127, 15
          %s131 = scalar_select %p130, %s127, 15
          %s132 = smul.addr %s129, 16
          %s133 = sadd.s32 %s131, %s132
          %s134 = smul.addr %s133, 8
          %s135 = scalar_lea.vmem %s0, %s134
          %s136 = smul.u32 16, %s19
        $region20: #{tpu_custom_call.1} parent=15 // pred_fallthru
          _
        // Predicated region
        $region21: #{tpu_custom_call.1} parent=15 // pred_check
          %p137 = pneg %p71
        $region22: #{tpu_custom_call.1} parent=15 // pred_check_branch
          %139 = sbr.rel (%p137) target = $region24
        $region23: #{tpu_custom_call.1} parent=15 // pred_region
          %p140 = scmp.lt.s32.totalorder %s18, 1
          %s141 = scalar_select %p140, %s18, 1
          %s142 = smul.addr %s141, 16
          %s143 = smul.addr %s142, 8
          %s144 = scalar_lea.vmem %s1, %s143
        $region24: #{tpu_custom_call.1} parent=15 // pred_fallthru
          _
      $region16: #{tpu_custom_call.1} parent=5 // pred_fallthru
        _
      %p145 = scmp.le.s32.totalorder 1, %s11
      %p146 = scmp.lt.s32.totalorder %s11, 3
      %p147 = pnand %p145, %p146
      %p148 = pneg %p147
      // Predicated region
      $region25: #{tpu_custom_call.1} parent=5 // pred_check
        _
      $region26: #{tpu_custom_call.1} parent=5 // pred_check_branch
        %150 = sbr.rel (%p147) target = $region28
      $region27: #{tpu_custom_call.1} parent=5 // pred_region
        %s151 = ssub.s32 %s11, 1
        %s152 = smul.u32 16, %s21
        %p153 = scmp.lt.s32.totalorder %s20, 1
        %s154 = scalar_select %p153, %s20, 1
        %p155 = scmp.lt.s32.totalorder %s152, 15
        %s156 = scalar_select %p155, %s152, 15
        %s157 = smul.addr %s154, 16
        %s158 = sadd.s32 %s156, %s157
        %s159 = smul.addr %s158, 8
        %s160 = scalar_lea.vmem %s0, %s159
        %p161 = pneg %p51
        %p162 = pneg %p48
        %p163 = scmp.lt.s32.totalorder %s20, 1
        %s164 = scalar_select %p163, %s20, 1
        %s165 = smul.addr %s164, 16
        %s166 = smul.addr %s165, 8
        %s167 = scalar_lea.vmem %s1, %s166
        %p168 = pneg %p77
        %p169 = pneg %p74
        %p170 = pneg %p105
        %p171 = pneg %p102
        %s172 = sand.u32 %s92, 1
        %s173 = scalar_lea.sflag [#allocation3], %s172
        %s174 = sand.u32 %s92, 1
        %s175 = smul.addr %s174, 128
        %s176 = scalar_lea.vmem [#allocation2], %s175
        %s177 = smul.u32 16, %s21
        %p178 = scmp.lt.s32.totalorder %s20, 1
        %s179 = scalar_select %p178, %s20, 1
        %p180 = scmp.lt.s32.totalorder %s177, 15
        %s181 = scalar_select %p180, %s177, 15
        %s182 = smul.addr %s179, 16
        %s183 = sadd.s32 %s181, %s182
        %s184 = smul.addr %s183, 8
        %s185 = scalar_lea.vmem %s0, %s184
        %s186 = smul.u32 16, %s21
        %p187 = scmp.lt.s32.totalorder %s20, 1
        %s188 = scalar_select %p187, %s20, 1
        %s189 = smul.addr %s188, 16
        %s190 = smul.addr %s189, 8
        %s191 = scalar_lea.vmem %s1, %s190
        %s192 = smul.u32 16, %s21
        %v193 = vld [vmem:[%s185] sm:$0xff]
        %v194 = vld [vmem:[%s185 + $0x8] sm:$0xff]
        %v195 = vld [vmem:[%s185 + $0x10] sm:$0xff]
        %v196 = vld [vmem:[%s185 + $0x18] sm:$0xff]
        %v197 = vld [vmem:[%s185 + $0x20] sm:$0xff]
        %v198 = vld [vmem:[%s185 + $0x28] sm:$0xff]
        %v199 = vld [vmem:[%s185 + $0x30] sm:$0xff]
        %v200 = vld [vmem:[%s185 + $0x38] sm:$0xff]
        %v201 = vld [vmem:[%s185 + $0x40] sm:$0xff]
        %v202 = vld [vmem:[%s185 + $0x48] sm:$0xff]
        %v203 = vld [vmem:[%s185 + $0x50] sm:$0xff]
        %v204 = vld [vmem:[%s185 + $0x58] sm:$0xff]
        %v205 = vld [vmem:[%s185 + $0x60] sm:$0xff]
        %v206 = vld [vmem:[%s185 + $0x68] sm:$0xff]
        %v207 = vld [vmem:[%s185 + $0x70] sm:$0xff]
        %v208 = vld [vmem:[%s185 + $0x78] sm:$0xff]
        %v209 = vld [vmem:[%s191] sm:$0xff]
        %v210 = vld [vmem:[%s191 + $0x8] sm:$0xff]
        %v211 = vld [vmem:[%s191 + $0x10] sm:$0xff]
        %v212 = vld [vmem:[%s191 + $0x18] sm:$0xff]
        %v213 = vld [vmem:[%s191 + $0x20] sm:$0xff]
        %v214 = vld [vmem:[%s191 + $0x28] sm:$0xff]
        %v215 = vld [vmem:[%s191 + $0x30] sm:$0xff]
        %v216 = vld [vmem:[%s191 + $0x38] sm:$0xff]
        %v217 = vld [vmem:[%s191 + $0x40] sm:$0xff]
        %v218 = vld [vmem:[%s191 + $0x48] sm:$0xff]
        %v219 = vld [vmem:[%s191 + $0x50] sm:$0xff]
        %v220 = vld [vmem:[%s191 + $0x58] sm:$0xff]
        %v221 = vld [vmem:[%s191 + $0x60] sm:$0xff]
        %v222 = vld [vmem:[%s191 + $0x68] sm:$0xff]
        %v223 = vld [vmem:[%s191 + $0x70] sm:$0xff]
        %v224 = vld [vmem:[%s191 + $0x78] sm:$0xff]
        %vm225 = vcmask 130048
        %v227 = vsel %vm225, %v193, 0
        %v230 = vsel %vm225, %v194, 0
        %v233 = vsel %vm225, %v195, 0
        %v236 = vsel %vm225, %v196, 0
        %v239 = vsel %vm225, %v197, 0
        %v242 = vsel %vm225, %v198, 0
        %v245 = vsel %vm225, %v199, 0
        %v248 = vsel %vm225, %v200, 0
        %v251 = vsel %vm225, %v201, 0
        %v254 = vsel %vm225, %v202, 0
        %v257 = vsel %vm225, %v203, 0
        %v260 = vsel %vm225, %v204, 0
        %v263 = vsel %vm225, %v205, 0
        %v266 = vsel %vm225, %v206, 0
        %v269 = vsel %vm225, %v207, 0
        %v272 = vsel %vm225, %v208, 0
        %v275 = vsel %vm225, %v209, 0
        %v278 = vsel %vm225, %v210, 0
        %v281 = vsel %vm225, %v211, 0
        %v284 = vsel %vm225, %v212, 0
        %v287 = vsel %vm225, %v213, 0
        %v290 = vsel %vm225, %v214, 0
        %v293 = vsel %vm225, %v215, 0
        %v296 = vsel %vm225, %v216, 0
        %v299 = vsel %vm225, %v217, 0
        %v302 = vsel %vm225, %v218, 0
        %v305 = vsel %vm225, %v219, 0
        %v308 = vsel %vm225, %v220, 0
        %v311 = vsel %vm225, %v221, 0
        %v314 = vsel %vm225, %v222, 0
        %v317 = vsel %vm225, %v223, 0
        %v320 = vsel %vm225, %v224, 0
        %322 = vmatprep.subr.mxu0 0.0
        %323 = vmatpush1.xpose.msra.mxu0 %v275
        %324 = vmatprep.subr.mxu0 0.0
        %325 = vmatpush1.xpose.msra.mxu0 %v278
        %326 = vmatprep.subr.mxu0 0.0
        %327 = vmatpush1.xpose.msra.mxu0 %v281
        %328 = vmatprep.subr.mxu0 0.0
        %329 = vmatpush1.xpose.msra.mxu0 %v284
        %330 = vmatprep.subr.mxu0 0.0
        %331 = vmatpush1.xpose.msra.mxu0 %v287
        %332 = vmatprep.subr.mxu0 0.0
        %333 = vmatpush1.xpose.msra.mxu0 %v290
        %334 = vmatprep.subr.mxu0 0.0
        %335 = vmatpush1.xpose.msra.mxu0 %v293
        %336 = vmatprep.subr.mxu0 0.0
        %337 = vmatpush1.xpose.msra.mxu0 %v296
        %338 = vmatprep.subr.mxu0 0.0
        %339 = vmatpush1.xpose.msra.mxu0 %v299
        %340 = vmatprep.subr.mxu0 0.0
        %341 = vmatpush1.xpose.msra.mxu0 %v302
        %342 = vmatprep.subr.mxu0 0.0
        %343 = vmatpush1.xpose.msra.mxu0 %v305
        %344 = vmatprep.subr.mxu0 0.0
        %345 = vmatpush1.xpose.msra.mxu0 %v308
        %346 = vmatprep.subr.mxu0 0.0
        %347 = vmatpush1.xpose.msra.mxu0 %v311
        %348 = vmatprep.subr.mxu0 0.0
        %349 = vmatpush1.xpose.msra.mxu0 %v314
        %350 = vmatprep.subr.mxu0 0.0
        %351 = vmatpush1.xpose.msra.mxu0 %v317
        %352 = vmatprep.subr.mxu0 0.0
        %353 = vmatpush1.xpose.msra.mxu0 %v320
        %354 = vmatprep.subr.mxu0 0.0
        %355 = vmatpush1.xpose.msra.mxu0 0.0
        %356 = vmatprep.subr.mxu0 0.0
        %357 = vmatpush1.xpose.msra.mxu0 0.0
        %358 = vmatprep.subr.mxu0 0.0
        %359 = vmatpush1.xpose.msra.mxu0 0.0
        %360 = vmatprep.subr.mxu0 0.0
        %361 = vmatpush1.xpose.msra.mxu0 0.0
        %362 = vmatprep.subr.mxu0 0.0
        %363 = vmatpush1.xpose.msra.mxu0 0.0
        %364 = vmatprep.subr.mxu0 0.0
        %365 = vmatpush1.xpose.msra.mxu0 0.0
        %366 = vmatprep.subr.mxu0 0.0
        %367 = vmatpush1.xpose.msra.mxu0 0.0
        %368 = vmatprep.subr.mxu0 0.0
        %369 = vmatpush1.xpose.msra.mxu0 0.0
        %370 = vmatprep.subr.mxu0 0.0
        %371 = vmatpush1.xpose.msra.mxu0 0.0
        %372 = vmatprep.subr.mxu0 0.0
        %373 = vmatpush1.xpose.msra.mxu0 0.0
        %374 = vmatprep.subr.mxu0 0.0
        %375 = vmatpush1.xpose.msra.mxu0 0.0
        %376 = vmatprep.subr.mxu0 0.0
        %377 = vmatpush1.xpose.msra.mxu0 0.0
        %378 = vmatprep.subr.mxu0 0.0
        %379 = vmatpush1.xpose.msra.mxu0 0.0
        %380 = vmatprep.subr.mxu0 0.0
        %381 = vmatpush1.xpose.msra.mxu0 0.0
        %382 = vmatprep.subr.mxu0 0.0
        %383 = vmatpush1.xpose.msra.mxu0 0.0
        %384 = vmatprep.subr.mxu0 0.0
        %385 = vmatpush1.xpose.msra.mxu0 0.0
        %386 = vmatprep.mubr.f32.mxu0 0.0
        %387 = vmatmul.mubr.f32.gmra.mrb[0].mxu0 %v227
        %v388 = vpop.f32.mrb[0].mxu0
        %v389 = vadd.f32 0.0, %v388
        %v390 = vpop.f32.mrb[0].mxu0
        %391 = vmatprep.mubr.f32.mxu0 0.0
        %392 = vmatmul.mubr.f32.gmra.mrb[0].mxu0 %v230
        %v393 = vpop.f32.mrb[0].mxu0
        %v394 = vadd.f32 0.0, %v393
        %v395 = vpop.f32.mrb[0].mxu0
        %396 = vmatprep.mubr.f32.mxu0 0.0
        %397 = vmatmul.mubr.f32.gmra.mrb[0].mxu0 %v233
        %v398 = vpop.f32.mrb[0].mxu0
        %v399 = vadd.f32 0.0, %v398
        %v400 = vpop.f32.mrb[0].mxu0
        %401 = vmatprep.mubr.f32.mxu0 0.0
        %402 = vmatmul.mubr.f32.gmra.mrb[0].mxu0 %v236
        %v403 = vpop.f32.mrb[0].mxu0
        %v404 = vadd.f32 0.0, %v403
        %v405 = vpop.f32.mrb[0].mxu0
        %406 = vmatprep.mubr.f32.mxu0 0.0
        %407 = vmatmul.mubr.f32.gmra.mrb[0].mxu0 %v239
        %v408 = vpop.f32.mrb[0].mxu0
        %v409 = vadd.f32 0.0, %v408
        %v410 = vpop.f32.mrb[0].mxu0
        %411 = vmatprep.mubr.f32.mxu0 0.0
        %412 = vmatmul.mubr.f32.gmra.mrb[0].mxu0 %v242
        %v413 = vpop.f32.mrb[0].mxu0
        %v414 = vadd.f32 0.0, %v413
        %v415 = vpop.f32.mrb[0].mxu0
        %416 = vmatprep.mubr.f32.mxu0 0.0
        %417 = vmatmul.mubr.f32.gmra.mrb[0].mxu0 %v245
        %v418 = vpop.f32.mrb[0].mxu0
        %v419 = vadd.f32 0.0, %v418
        %v420 = vpop.f32.mrb[0].mxu0
        %421 = vmatprep.mubr.f32.mxu0 0.0
        %422 = vmatmul.mubr.f32.gmra.mrb[0].mxu0 %v248
        %v423 = vpop.f32.mrb[0].mxu0
        %v424 = vadd.f32 0.0, %v423
        %v425 = vpop.f32.mrb[0].mxu0
        %426 = vmatprep.mubr.f32.mxu0 0.0
        %427 = vmatmul.mubr.f32.gmra.mrb[0].mxu0 %v251
        %v428 = vpop.f32.mrb[0].mxu0
        %v429 = vadd.f32 0.0, %v428
        %v430 = vpop.f32.mrb[0].mxu0
        %431 = vmatprep.mubr.f32.mxu0 0.0
        %432 = vmatmul.mubr.f32.gmra.mrb[0].mxu0 %v254
        %v433 = vpop.f32.mrb[0].mxu0
        %v434 = vadd.f32 0.0, %v433
        %v435 = vpop.f32.mrb[0].mxu0
        %436 = vmatprep.mubr.f32.mxu0 0.0
        %437 = vmatmul.mubr.f32.gmra.mrb[0].mxu0 %v257
        %v438 = vpop.f32.mrb[0].mxu0
        %v439 = vadd.f32 0.0, %v438
        %v440 = vpop.f32.mrb[0].mxu0
        %441 = vmatprep.mubr.f32.mxu0 0.0
        %442 = vmatmul.mubr.f32.gmra.mrb[0].mxu0 %v260
        %v443 = vpop.f32.mrb[0].mxu0
        %v444 = vadd.f32 0.0, %v443
        %v445 = vpop.f32.mrb[0].mxu0
        %446 = vmatprep.mubr.f32.mxu0 0.0
        %447 = vmatmul.mubr.f32.gmra.mrb[0].mxu0 %v263
        %v448 = vpop.f32.mrb[0].mxu0
        %v449 = vadd.f32 0.0, %v448
        %v450 = vpop.f32.mrb[0].mxu0
        %451 = vmatprep.mubr.f32.mxu0 0.0
        %452 = vmatmul.mubr.f32.gmra.mrb[0].mxu0 %v266
        %v453 = vpop.f32.mrb[0].mxu0
        %v454 = vadd.f32 0.0, %v453
        %v455 = vpop.f32.mrb[0].mxu0
        %456 = vmatprep.mubr.f32.mxu0 0.0
        %457 = vmatmul.mubr.f32.gmra.mrb[0].mxu0 %v269
        %v458 = vpop.f32.mrb[0].mxu0
        %v459 = vadd.f32 0.0, %v458
        %v460 = vpop.f32.mrb[0].mxu0
        %461 = vmatprep.mubr.f32.mxu0 0.0
        %462 = vmatmul.mubr.f32.gmra.mrb[0].mxu0 %v272
        %v463 = vpop.f32.mrb[0].mxu0
        %v464 = vadd.f32 0.0, %v463
        %v465 = vpop.f32.mrb[0].mxu0
        %466 = vdwg.mxu0
        %v467 = vmul.f32 %v389, 0.25
        %v468 = vmul.f32 %v394, 0.25
        %v469 = vmul.f32 %v399, 0.25
        %v470 = vmul.f32 %v404, 0.25
        %v471 = vmul.f32 %v409, 0.25
        %v472 = vmul.f32 %v414, 0.25
        %v473 = vmul.f32 %v419, 0.25
        %v474 = vmul.f32 %v424, 0.25
        %v475 = vmul.f32 %v429, 0.25
        %v476 = vmul.f32 %v434, 0.25
        %v477 = vmul.f32 %v439, 0.25
        %v478 = vmul.f32 %v444, 0.25
        %v479 = vmul.f32 %v449, 0.25
        %v480 = vmul.f32 %v454, 0.25
        %v481 = vmul.f32 %v459, 0.25
        %v482 = vmul.f32 %v464, 0.25
        %483 = vmax.xlane.f32.xlu0 %v467
        %v484 = vpop.xlane.xlu0 %483
        %485 = vmax.xlane.f32.xlu0 %v468
        %v486 = vpop.xlane.xlu0 %485
        %487 = vmax.xlane.f32.xlu0 %v469
        %v488 = vpop.xlane.xlu0 %487
        %489 = vmax.xlane.f32.xlu0 %v470
        %v490 = vpop.xlane.xlu0 %489
        %491 = vmax.xlane.f32.xlu0 %v471
        %v492 = vpop.xlane.xlu0 %491
        %493 = vmax.xlane.f32.xlu0 %v472
        %v494 = vpop.xlane.xlu0 %493
        %495 = vmax.xlane.f32.xlu0 %v473
        %v496 = vpop.xlane.xlu0 %495
        %497 = vmax.xlane.f32.xlu0 %v474
        %v498 = vpop.xlane.xlu0 %497
        %499 = vmax.xlane.f32.xlu0 %v475
        %v500 = vpop.xlane.xlu0 %499
        %501 = vmax.xlane.f32.xlu0 %v476
        %v502 = vpop.xlane.xlu0 %501
        %503 = vmax.xlane.f32.xlu0 %v477
        %v504 = vpop.xlane.xlu0 %503
        %505 = vmax.xlane.f32.xlu0 %v478
        %v506 = vpop.xlane.xlu0 %505
        %507 = vmax.xlane.f32.xlu0 %v479
        %v508 = vpop.xlane.xlu0 %507
        %509 = vmax.xlane.f32.xlu0 %v480
        %v510 = vpop.xlane.xlu0 %509
        %511 = vmax.xlane.f32.xlu0 %v481
        %v512 = vpop.xlane.xlu0 %511
        %513 = vmax.xlane.f32.xlu0 %v482
        %v514 = vpop.xlane.xlu0 %513
        %v515 = vsub.f32 %v467, %v484
        %v516 = vsub.f32 %v468, %v486
        %v517 = vsub.f32 %v469, %v488
        %v518 = vsub.f32 %v470, %v490
        %v519 = vsub.f32 %v471, %v492
        %v520 = vsub.f32 %v472, %v494
        %v521 = vsub.f32 %v473, %v496
        %v522 = vsub.f32 %v474, %v498
        %v523 = vsub.f32 %v475, %v500
        %v524 = vsub.f32 %v476, %v502
        %v525 = vsub.f32 %v477, %v504
        %v526 = vsub.f32 %v478, %v506
        %v527 = vsub.f32 %v479, %v508
        %v528 = vsub.f32 %v480, %v510
        %v529 = vsub.f32 %v481, %v512
        %v530 = vsub.f32 %v482, %v514
        %v531 = vmul.f32 %v515, 1.442695
        %v532 = vpow.pop %v531
        %v533 = vmul.f32 %v516, 1.442695
        %v534 = vpow.pop %v533
        %v535 = vmul.f32 %v517, 1.442695
        %v536 = vpow.pop %v535
        %v537 = vmul.f32 %v518, 1.442695
        %v538 = vpow.pop %v537
        %v539 = vmul.f32 %v519, 1.442695
        %v540 = vpow.pop %v539
        %v541 = vmul.f32 %v520, 1.442695
        %v542 = vpow.pop %v541
        %v543 = vmul.f32 %v521, 1.442695
        %v544 = vpow.pop %v543
        %v545 = vmul.f32 %v522, 1.442695
        %v546 = vpow.pop %v545
        %v547 = vmul.f32 %v523, 1.442695
        %v548 = vpow.pop %v547
        %v549 = vmul.f32 %v524, 1.442695
        %v550 = vpow.pop %v549
        %v551 = vmul.f32 %v525, 1.442695
        %v552 = vpow.pop %v551
        %v553 = vmul.f32 %v526, 1.442695
        %v554 = vpow.pop %v553
        %v555 = vmul.f32 %v527, 1.442695
        %v556 = vpow.pop %v555
        %v557 = vmul.f32 %v528, 1.442695
        %v558 = vpow.pop %v557
        %v559 = vmul.f32 %v529, 1.442695
        %v560 = vpow.pop %v559
        %v561 = vmul.f32 %v530, 1.442695
        %v562 = vpow.pop %v561
        %563 = vadd.xlane.f32.xlu0 %v532
        %v564 = vpop.xlane.xlu0 %563
        %565 = vadd.xlane.f32.xlu0 %v534
        %v566 = vpop.xlane.xlu0 %565
        %567 = vadd.xlane.f32.xlu0 %v536
        %v568 = vpop.xlane.xlu0 %567
        %569 = vadd.xlane.f32.xlu0 %v538
        %v570 = vpop.xlane.xlu0 %569
        %571 = vadd.xlane.f32.xlu0 %v540
        %v572 = vpop.xlane.xlu0 %571
        %573 = vadd.xlane.f32.xlu0 %v542
        %v574 = vpop.xlane.xlu0 %573
        %575 = vadd.xlane.f32.xlu0 %v544
        %v576 = vpop.xlane.xlu0 %575
        %577 = vadd.xlane.f32.xlu0 %v546
        %v578 = vpop.xlane.xlu0 %577
        %579 = vadd.xlane.f32.xlu0 %v548
        %v580 = vpop.xlane.xlu0 %579
        %581 = vadd.xlane.f32.xlu0 %v550
        %v582 = vpop.xlane.xlu0 %581
        %583 = vadd.xlane.f32.xlu0 %v552
        %v584 = vpop.xlane.xlu0 %583
        %585 = vadd.xlane.f32.xlu0 %v554
        %v586 = vpop.xlane.xlu0 %585
        %587 = vadd.xlane.f32.xlu0 %v556
        %v588 = vpop.xlane.xlu0 %587
        %589 = vadd.xlane.f32.xlu0 %v558
        %v590 = vpop.xlane.xlu0 %589
        %591 = vadd.xlane.f32.xlu0 %v560
        %v592 = vpop.xlane.xlu0 %591
        %593 = vadd.xlane.f32.xlu0 %v562
        %v594 = vpop.xlane.xlu0 %593
        %v595 = vrcp.pop %v564
        %v596 = vrcp.pop %v566
        %v597 = vrcp.pop %v568
        %v598 = vrcp.pop %v570
        %v599 = vrcp.pop %v572
        %v600 = vrcp.pop %v574
        %v601 = vrcp.pop %v576
        %v602 = vrcp.pop %v578
        %v603 = vrcp.pop %v580
        %v604 = vrcp.pop %v582
        %v605 = vrcp.pop %v584
        %v606 = vrcp.pop %v586
        %v607 = vrcp.pop %v588
        %v608 = vrcp.pop %v590
        %v609 = vrcp.pop %v592
        %v610 = vrcp.pop %v594
        %v611 = vmul.f32 %v532, %v595
        %v612 = vmul.f32 %v534, %v596
        %v613 = vmul.f32 %v536, %v597
        %v614 = vmul.f32 %v538, %v598
        %v615 = vmul.f32 %v540, %v599
        %v616 = vmul.f32 %v542, %v600
        %v617 = vmul.f32 %v544, %v601
        %v618 = vmul.f32 %v546, %v602
        %v619 = vmul.f32 %v548, %v603
        %v620 = vmul.f32 %v550, %v604
        %v621 = vmul.f32 %v552, %v605
        %v622 = vmul.f32 %v554, %v606
        %v623 = vmul.f32 %v556, %v607
        %v624 = vmul.f32 %v558, %v608
        %v625 = vmul.f32 %v560, %v609
        %v626 = vmul.f32 %v562, %v610
        %627 = vst [vmem:[%s176] sm:$0xff] %v611
        %628 = vst [vmem:[%s176 + $0x8] sm:$0xff] %v612
        %629 = vst [vmem:[%s176 + $0x10] sm:$0xff] %v613
        %630 = vst [vmem:[%s176 + $0x18] sm:$0xff] %v614
        %631 = vst [vmem:[%s176 + $0x20] sm:$0xff] %v615
        %632 = vst [vmem:[%s176 + $0x28] sm:$0xff] %v616
        %633 = vst [vmem:[%s176 + $0x30] sm:$0xff] %v617
        %634 = vst [vmem:[%s176 + $0x38] sm:$0xff] %v618
        %635 = vst [vmem:[%s176 + $0x40] sm:$0xff] %v619
        %636 = vst [vmem:[%s176 + $0x48] sm:$0xff] %v620
        %637 = vst [vmem:[%s176 + $0x50] sm:$0xff] %v621
        %638 = vst [vmem:[%s176 + $0x58] sm:$0xff] %v622
        %639 = vst [vmem:[%s176 + $0x60] sm:$0xff] %v623
        %640 = vst [vmem:[%s176 + $0x68] sm:$0xff] %v624
        %641 = vst [vmem:[%s176 + $0x70] sm:$0xff] %v625
        %642 = vst [vmem:[%s176 + $0x78] sm:$0xff] %v626
        %s643 = sand.u32 %s92, 1
        %s644 = scalar_lea.sflag [#allocation3], %s643
        %s645 = sand.u32 %s92, 1
        %s646 = smul.addr %s645, 128
        %s647 = scalar_lea.vmem [#allocation2], %s646
        // Predicated region
        $region29: #{tpu_custom_call.1} parent=27 // pred_check
          %p648 = pneg %p102
        $region30: #{tpu_custom_call.1} parent=27 // pred_check_branch
          %650 = sbr.rel (%p648) target = $region32
        $region31: #{tpu_custom_call.1} parent=27 // pred_region
          %s651 = smul.u32 16, %s21
          %s653 = ssub.s32 2048, 2048
          %654 = vsyncadd %s644, %s653
          %s655 = smul.addr %s20, 16
          %s656 = sadd.s32 %s651, %s655
          %s657 = smul.addr %s656, 128
          %s658 = scalar_lea.hbm %s2, %s657
          %s659 = sshll.u32 %s647, 4
          %s660 = int_to_ptr.vmem [resolvable:$true] %s659
          %665 = dma.vmem_to_hbm [thread:$0]  %s660, 2048, %s658, %s644, 128, 128, 8
        $region32: #{tpu_custom_call.1} parent=27 // pred_fallthru
          _
      $region28: #{tpu_custom_call.1} parent=5 // pred_fallthru
        _
      %p666 = scmp.le.s32.totalorder 2, %s11
      // Predicated region
      $region33: #{tpu_custom_call.1} parent=5 // pred_check
        %p667 = pneg %p666
      $region34: #{tpu_custom_call.1} parent=5 // pred_check_branch
        %669 = sbr.rel (%p667) target = $region36
      $region35: #{tpu_custom_call.1} parent=5 // pred_region
        %s670 = ssub.s32 %s11, 2
        // Predicated region
        $region37: #{tpu_custom_call.1} parent=35 // pred_check
          %p671 = pneg %p108
        $region38: #{tpu_custom_call.1} parent=35 // pred_check_branch
          %673 = sbr.rel (%p671) target = $region40
        $region39: #{tpu_custom_call.1} parent=35 // pred_region
          %s674 = sand.u32 %s93, 1
          %s675 = scalar_lea.sflag [#allocation3], %s674
          %s676 = sand.u32 %s93, 1
          %s677 = smul.addr %s676, 128
          %s678 = scalar_lea.vmem [#allocation2], %s677
          %679 = dma.done %s675, 2048
        $region40: #{tpu_custom_call.1} parent=35 // pred_fallthru
          _
      $region36: #{tpu_custom_call.1} parent=5 // pred_fallthru
        _
    $region6: #{tpu_custom_call.1} parent=1 // loop_footer
      %s15 = sadd.s32 1, %s11
    $region7: #{tpu_custom_call.1} parent=1 // loop_footer_branch
      %10 = sbr.rel target = $region3
    $region8: #{tpu_custom_call.1} parent=1 // loop_exit
      _
    %680 = vsyncpa [#allocation3], 1
    %s681 = scalar_lea.sflag [#allocation3], 1
    %682 = vsyncpa %s681, 1

</llo_original>
